<compile_context>
chip_gen: v6e
topology: v6e:2x2x1
jax: 0.10.0
libtpu: 0.0.40
codegen_flags: <defaults>
</compile_context>

<pallas_src>
import numpy as np
import jax
import jax.numpy as jnp
from jax.experimental import pallas as pl
from jax.experimental.pallas import tpu as pltpu


def _inductive_offset_kernel(lhs_ref, off_ref, pre_ref, post_ref, out_ref):
    # lhs_ref:  (n, TILE_B, K)   stacked [center ; offset] rows (K = 2E or E)
    # off_ref:  (n, TILE_B, E)   stacked offsets (always f32)
    # pre_ref:  (K, M)           VMEM-resident weights
    # post_ref: (M, E)           VMEM-resident weights
    # out_ref:  (TILE_B, E)
    n, tb, k = lhs_ref.shape

    # Single batch-stacked MXU dot over all branches with full K.
    lhs = lhs_ref[...].reshape(n * tb, k)
    t = jnp.dot(lhs, pre_ref[...], preferred_element_type=jnp.float32)
    t = jnp.maximum(t, 0.0)                                   # ReLU

    # agg_func = torch.min over the stacked branch dimension (values only).
    combined = t[0:tb]
    for i in range(1, n):
        combined = jnp.minimum(combined, t[i * tb:(i + 1) * tb])

    gate = jnp.dot(combined.astype(post_ref.dtype), post_ref[...],
                   preferred_element_type=jnp.float32)

    off_min = off_ref[0]
    for i in range(1, n):
        off_min = jnp.minimum(off_min, off_ref[i])

    out_ref[...] = (off_min * jax.nn.sigmoid(gate)).astype(out_ref.dtype)


def _round_up(x, m):
    return (x + m - 1) // m * m


def _vmem_estimate(tile_b, n, feat_k, e, m, mm_itemsize):
    # double-buffered activations + resident weights + f32 intermediates
    act = 2 * (n * tile_b * feat_k * mm_itemsize   # stacked lhs
               + n * tile_b * e * 4                # stacked offsets (f32)
               + tile_b * e * 4)                   # output (f32)
    weights = 2 * (feat_k * m + m * e) * mm_itemsize
    scratch = (n * tile_b * m + tile_b * m + tile_b * e) * 4
    return act + weights + scratch


def inductive_offset_set(embeds1, embeds1_o, embeds2, embeds2_o,
                         pre_mats, post_mats,
                         embeds3=None, embeds3_o=None, *,
                         offset_use_center=True,
                         tile_b=None,
                         matmul_dtype=None):
    """Pallas forward of InductiveOffsetSet (agg_func = torch.min).

    embeds*:   (B, E) float32
    pre_mats:  (2E, M) if offset_use_center else (E, M)
    post_mats: (M, E)
    matmul_dtype: e.g. jnp.bfloat16 -> run MXU dots in bf16 with f32 accumulate.
    returns:   (B, E) in the offsets' dtype.
    """
    B, E = embeds1.shape
    M = post_mats.shape[0]
    out_dtype = embeds1_o.dtype

    centers = [embeds1, embeds2]
    offsets = [embeds1_o, embeds2_o]
    if embeds3_o is not None:
        centers.append(embeds3)
        offsets.append(embeds3_o)
    n = len(offsets)

    # Fold torch.cat([center, offset], dim=1) into a branch-stacked LHS so the
    # kernel runs a single full-K matmul against the untouched pre_mats.
    if offset_use_center:
        lhs = jnp.stack([jnp.concatenate([c, o], axis=1)
                         for c, o in zip(centers, offsets)], axis=0)   # (n, B, 2E)
    else:
        lhs = jnp.stack(offsets, axis=0)                               # (n, B, E)
    off = jnp.stack(offsets, axis=0)                                   # (n, B, E)
    K = lhs.shape[-1]
    assert pre_mats.shape == (K, M) and post_mats.shape == (M, E)

    pre, post = pre_mats, post_mats
    if matmul_dtype is not None:
        lhs = lhs.astype(matmul_dtype)
        pre = pre.astype(matmul_dtype)
        post = post.astype(matmul_dtype)
    mm_itemsize = jnp.dtype(lhs.dtype).itemsize

    # Pick a batch tile that fits comfortably inside VMEM (v7x: 64 MiB total,
    # 32 MiB default scoped limit).
    if tile_b is None:
        tile_b = 512
        while tile_b > 8 and _vmem_estimate(tile_b, n, K, E, M, mm_itemsize) > (24 << 20):
            tile_b //= 2
    tile_b = max(8, min(tile_b, _round_up(B, 8)))
    tile_b = _round_up(tile_b, 8)

    B_pad = _round_up(B, tile_b)
    if B_pad != B:
        pad = B_pad - B
        lhs = jnp.pad(lhs, ((0, 0), (0, pad), (0, 0)))
        off = jnp.pad(off, ((0, 0), (0, pad), (0, 0)))
    n_tiles = B_pad // tile_b

    vmem_limit = int(min(64 << 20,
                         max(16 << 20,
                             2 * _vmem_estimate(tile_b, n, K, E, M, mm_itemsize))))

    out = pl.pallas_call(
        _inductive_offset_kernel,
        out_shape=jax.ShapeDtypeStruct((B_pad, E), out_dtype),
        grid=(n_tiles,),
        in_specs=[
            pl.BlockSpec((n, tile_b, K), lambda i: (0, i, 0)),   # stacked [center; offset]
            pl.BlockSpec((n, tile_b, E), lambda i: (0, i, 0)),   # stacked offsets
            pl.BlockSpec((K, M), lambda i: (0, 0)),              # pre_mats  (resident)
            pl.BlockSpec((M, E), lambda i: (0, 0)),              # post_mats (resident)
        ],
        out_specs=pl.BlockSpec((tile_b, E), lambda i: (i, 0)),
        compiler_params=pltpu.CompilerParams(
            dimension_semantics=("parallel",),
            vmem_limit_bytes=vmem_limit),
    )(lhs, off, pre, post)

    return out[:B]


def _xavier_uniform(key, shape):
    fan_in, fan_out = shape
    bound = float(np.sqrt(6.0 / (fan_in + fan_out)))
    return jax.random.uniform(key, shape, jnp.float32, -bound, bound)


def _reference(embeds1, embeds1_o, embeds2, embeds2_o, pre_mats, post_mats,
               embeds3=None, embeds3_o=None, offset_use_center=True):
    # plain-JAX mirror of the PyTorch forward
    centers = [embeds1, embeds2]
    offsets = [embeds1_o, embeds2_o]
    if embeds3_o is not None:
        centers.append(embeds3)
        offsets.append(embeds3_o)
    if offset_use_center:
        temps = [jnp.concatenate([c, o], axis=1) for c, o in zip(centers, offsets)]
    else:
        temps = offsets
    ts = [jax.nn.relu(t @ pre_mats) for t in temps]
    combined = jnp.min(jnp.stack(ts, axis=0), axis=0) @ post_mats
    offset_min = jnp.min(jnp.stack(offsets, axis=0), axis=0)
    return offset_min * jax.nn.sigmoid(combined)


if __name__ == "__main__":
    # lane-dense, module-consistent shapes: batch=256, expand_dims=128, mode_dims=128
    B, E, M = 256, 128, 128
    key = jax.random.PRNGKey(0)
    k = jax.random.split(key, 8)

    embeds1   = jax.random.normal(k[0], (B, E), jnp.float32)
    embeds1_o = jax.nn.relu(jax.random.normal(k[1], (B, E), jnp.float32))
    embeds2   = jax.random.normal(k[2], (B, E), jnp.float32)
    embeds2_o = jax.nn.relu(jax.random.normal(k[3], (B, E), jnp.float32))
    embeds3   = jax.random.normal(k[4], (B, E), jnp.float32)
    embeds3_o = jax.nn.relu(jax.random.normal(k[5], (B, E), jnp.float32))

    # deterministic xavier_uniform init of the OffsetSet parameters
    pre_mats  = _xavier_uniform(k[6], (2 * E, M))   # premat_Real_offset
    post_mats = _xavier_uniform(k[7], (M, E))       # postmat_Real_offset

    # 2-branch forward, f32 matmuls.
    out = inductive_offset_set(embeds1, embeds1_o, embeds2, embeds2_o,
                               pre_mats, post_mats, tile_b=128)
    out = jax.block_until_ready(out)
    ref = _reference(embeds1, embeds1_o, embeds2, embeds2_o, pre_mats, post_mats)
    np.testing.assert_allclose(np.asarray(out), np.asarray(ref),
                               rtol=1e-4, atol=1e-5)

    # 3-branch forward (optional embeds3 path of the module), f32 matmuls.
    out3 = inductive_offset_set(embeds1, embeds1_o, embeds2, embeds2_o,
                                pre_mats, post_mats, embeds3, embeds3_o,
                                tile_b=128)
    out3 = jax.block_until_ready(out3)
    ref3 = _reference(embeds1, embeds1_o, embeds2, embeds2_o, pre_mats, post_mats,
                      embeds3, embeds3_o)
    np.testing.assert_allclose(np.asarray(out3), np.asarray(ref3),
                               rtol=1e-4, atol=1e-5)

    # bf16 matmul path (bf16-native MXU on v6e/v7x, f32 accumulation).
    out_bf = inductive_offset_set(embeds1, embeds1_o, embeds2, embeds2_o,
                                  pre_mats, post_mats, tile_b=128,
                                  matmul_dtype=jnp.bfloat16)
    out_bf = jax.block_until_ready(out_bf)
    np.testing.assert_allclose(np.asarray(out_bf), np.asarray(ref),
                               rtol=5e-2, atol=5e-2)

    print("KERNEL_OK")
</pallas_src>

<mosaic_0001>
module attributes {stable_mosaic.version = 11 : i64} {
  func.func @_inductive_offset_kernel(%arg0: i32, %arg1: memref<2x128x256xf32, #tpu.memory_space<vmem>>, %arg2: memref<2x128x128xf32, #tpu.memory_space<vmem>>, %arg3: memref<256x128xf32, #tpu.memory_space<vmem>>, %arg4: memref<128x128xf32, #tpu.memory_space<vmem>>, %arg5: memref<128x128xf32, #tpu.memory_space<vmem>>) attributes {dimension_semantics = [#tpu.dimension_semantics<parallel>], iteration_bounds = array<i64: 2>, scalar_prefetch = 0 : i64, scratch_operands = 0 : i64, tpu.core_type = #tpu.core_type<tc>, window_params = [{transform_indices = @transform_0, window_bounds = array<i64: 2, 128, 256>}, {transform_indices = @transform_1, window_bounds = array<i64: 2, 128, 128>}, {pipeline_mode = #tpu.pipeline_mode<synchronous>, transform_indices = @transform_2, window_bounds = array<i64: 256, 128>}, {pipeline_mode = #tpu.pipeline_mode<synchronous>, transform_indices = @transform_3, window_bounds = array<i64: 128, 128>}, {transform_indices = @transform_4, window_bounds = array<i64: 128, 128>}]} {
    %c0 = arith.constant 0 : index
    %c0_0 = arith.constant 0 : index
    %c0_1 = arith.constant 0 : index
    %0 = vector.load %arg1[%c0, %c0_0, %c0_1] : memref<2x128x256xf32, #tpu.memory_space<vmem>>, vector<2x128x256xf32>
    %1 = vector.shape_cast %0 : vector<2x128x256xf32> to vector<256x256xf32>
    %c0_2 = arith.constant 0 : index
    %c0_3 = arith.constant 0 : index
    %2 = vector.load %arg3[%c0_2, %c0_3] : memref<256x128xf32, #tpu.memory_space<vmem>>, vector<256x128xf32>
    %cst = arith.constant dense<0.000000e+00> : vector<256x128xf32>
    %3 = tpu.matmul %1, %2, %cst {dimension_numbers = #tpu.dot_dimension_numbers<[1], [0], [0], [1], [0, 0, 1, 1], [], []>} : vector<256x256xf32>, vector<256x128xf32>, vector<256x128xf32> -> vector<256x128xf32>
    %cst_4 = arith.constant 0.000000e+00 : f32
    %4 = vector.broadcast %cst_4 : f32 to vector<256x128xf32>
    %5 = arith.maximumf %3, %4 : vector<256x128xf32>
    %6 = vector.extract_strided_slice %5 {offsets = [0, 0], sizes = [128, 128], strides = [1, 1]} : vector<256x128xf32> to vector<128x128xf32>
    %7 = vector.extract_strided_slice %5 {offsets = [128, 0], sizes = [128, 128], strides = [1, 1]} : vector<256x128xf32> to vector<128x128xf32>
    %8 = arith.minimumf %6, %7 : vector<128x128xf32>
    %c0_5 = arith.constant 0 : index
    %c0_6 = arith.constant 0 : index
    %9 = vector.load %arg4[%c0_5, %c0_6] : memref<128x128xf32, #tpu.memory_space<vmem>>, vector<128x128xf32>
    %cst_7 = arith.constant dense<0.000000e+00> : vector<128x128xf32>
    %10 = tpu.matmul %8, %9, %cst_7 {dimension_numbers = #tpu.dot_dimension_numbers<[1], [0], [0], [1], [0, 0, 1, 1], [], []>} : vector<128x128xf32>, vector<128x128xf32>, vector<128x128xf32> -> vector<128x128xf32>
    %c0_8 = arith.constant 0 : index
    %c0_9 = arith.constant 0 : index
    %c0_10 = arith.constant 0 : index
    %11 = vector.load %arg2[%c0_8, %c0_9, %c0_10] : memref<2x128x128xf32, #tpu.memory_space<vmem>>, vector<1x128x128xf32>
    %12 = vector.shape_cast %11 : vector<1x128x128xf32> to vector<128x128xf32>
    %c1 = arith.constant 1 : index
    %c0_11 = arith.constant 0 : index
    %c0_12 = arith.constant 0 : index
    %13 = vector.load %arg2[%c1, %c0_11, %c0_12] : memref<2x128x128xf32, #tpu.memory_space<vmem>>, vector<1x128x128xf32>
    %14 = vector.shape_cast %13 : vector<1x128x128xf32> to vector<128x128xf32>
    %15 = arith.minimumf %12, %14 : vector<128x128xf32>
    %16 = arith.negf %10 : vector<128x128xf32>
    %17 = math.exp %16 : vector<128x128xf32>
    %cst_13 = arith.constant 1.000000e+00 : f32
    %18 = vector.broadcast %cst_13 : f32 to vector<128x128xf32>
    %19 = arith.addf %18, %17 : vector<128x128xf32>
    %20 = arith.divf %18, %19 : vector<128x128xf32>
    %21 = arith.mulf %15, %20 : vector<128x128xf32>
    %c0_14 = arith.constant 0 : index
    %c0_15 = arith.constant 0 : index
    %22 = vector.load %arg5[%c0_14, %c0_15] : memref<128x128xf32, #tpu.memory_space<vmem>>, vector<128x128xf32>
    tpu.vector_store %arg5[%c0_14, %c0_15], %21 {strides = array<i32>} : memref<128x128xf32, #tpu.memory_space<vmem>>, vector<128x128xf32>,
    return
  }
  func.func @transform_0(%arg0: i32) -> (i32, i32, i32) {
    %c0_i32 = arith.constant 0 : i32
    %c0_i32_0 = arith.constant 0 : i32
    %c0_i32_1 = arith.constant 0 : i32
    return %c0_i32, %arg0, %c0_i32_0 : i32, i32, i32
  }
  func.func @transform_1(%arg0: i32) -> (i32, i32, i32) {
    %c0_i32 = arith.constant 0 : i32
    %c0_i32_0 = arith.constant 0 : i32
    %c0_i32_1 = arith.constant 0 : i32
    return %c0_i32, %arg0, %c0_i32_0 : i32, i32, i32
  }
  func.func @transform_2(%arg0: i32) -> (i32, i32) {
    %c0_i32 = arith.constant 0 : i32
    %c0_i32_0 = arith.constant 0 : i32
    %c0_i32_1 = arith.constant 0 : i32
    return %c0_i32, %c0_i32_0 : i32, i32
  }
  func.func @transform_3(%arg0: i32) -> (i32, i32) {
    %c0_i32 = arith.constant 0 : i32
    %c0_i32_0 = arith.constant 0 : i32
    %c0_i32_1 = arith.constant 0 : i32
    return %c0_i32, %c0_i32_0 : i32, i32
  }
  func.func @transform_4(%arg0: i32) -> (i32, i32) {
    %c0_i32 = arith.constant 0 : i32
    %c0_i32_0 = arith.constant 0 : i32
    return %arg0, %c0_i32 : i32, i32
  }
}

</mosaic_0001>

<llo_original>
// kernel: tpu_custom_call.1
$region0: #{tpu_custom_call.1}
  #allocation0 [shape = 'u32[]', space=smem, size = 0x4, offset = 0x4, fixed_abs, tag = 'smem constant byte address 0x4 - core index']
  #allocation1 [shape = 'u32[144,128]{1,0:T(1,128)}', space=vmem, size = 0x12000, scoped, tag = 'internal scratch']
  #allocation11 [shape = 's32[]', space=sflag, size = 0x4, offset = 0, fixed_abs, tag = 'sflag constant byte address 0x0 - dummy sync flag']
  #allocation13 [shape = 's32[]', space=sflag, size = 0x4, offset = 0, fixed_abs, tag = 'sflag constant byte address 0x0 - dummy sync flag']
  %s0 = inlined_call_operand.hbm [shape: f32[2,256,256], index: 0, kind: input, shape index: {}]
  %s1 = inlined_call_operand.hbm [shape: f32[2,256,128], index: 1, kind: input, shape index: {}]
  %s2 = inlined_call_operand.hbm [shape: f32[256,128], index: 2, kind: input, shape index: {}]
  %s3 = inlined_call_operand.hbm [shape: f32[128,128], index: 3, kind: input, shape index: {}]
  %s4 = inlined_call_operand.hbm [shape: f32[256,128], index: 4, kind: output, shape index: {}]
  %s5 = sld [smem:[#allocation0]]
  $region65: #{tpu_custom_call.1} parent=0
    _
  %s7 = ssub.s32 1, %s5
  %s8 = scalar_select 0, %s7, %s5
  $region1: #{tpu_custom_call.1} parent=0
    #allocation2 [shape = 'u8[524288]{0}', space=vmem, size = 0x80000, scoped, tag = 'input window, operand 0']
    #allocation3 [shape = 's32[2]{0}', space=sflag, size = 0x8, scoped, tag = 'scoped memory for tpu_custom_call.1']
    #allocation4 [shape = 's32[2]{0}', space=sflag, size = 0x8, scoped, tag = 'scoped memory for tpu_custom_call.1']
    #allocation5 [shape = 'u8[262144]{0}', space=vmem, size = 0x40000, scoped, tag = 'input window, operand 1']
    #allocation6 [shape = 's32[2]{0}', space=sflag, size = 0x8, scoped, tag = 'scoped memory for tpu_custom_call.1']
    #allocation7 [shape = 'u8[131072]{0}', space=vmem, size = 0x20000, scoped, tag = 'input window, operand 2, single buffered']
    #allocation8 [shape = 'u8[65536]{0}', space=vmem, size = 0x10000, scoped, tag = 'input window, operand 3, single buffered']
    #allocation9 [shape = 's32[1]{0}', space=sflag, size = 0x4, scoped, tag = 'scoped memory for tpu_custom_call.1']
    #allocation10 [shape = 'u8[131072]{0}', space=vmem, size = 0x20000, scoped, tag = 'output window, operand 0']
    %9 = vsyncpa [#allocation3], 0
    %s10 = scalar_lea.sflag [#allocation3], 1
    %11 = vsyncpa %s10, 0
    %12 = vsyncpa [#allocation6], 0
    %s13 = scalar_lea.sflag [#allocation6], 1
    %14 = vsyncpa %s13, 0
    %15 = vsyncpa [#allocation9], 0
    %16 = vsyncpa [#allocation4], 0
    %s17 = scalar_lea.sflag [#allocation4], 1
    %18 = vsyncpa %s17, 0
    loop: start=0, step=1, limit=4
    $region2: #{tpu_custom_call.1} parent=1 // loop_pre_header
      _
    $region3: #{tpu_custom_call.1} parent=1 // loop_header
      %s20 = sphi 0, %s24
      %p21 = scmp.ge.s32.totalorder %s20, 4
      %s30 = sphi 0, %s32
      %s33 = sphi 0, %s30
      %s34 = sphi 0, %s33
      %s50 = sphi 0, %s34
      %s56 = sphi 0, %s58
      %s59 = sphi 0, %s56
      %s60 = sphi 0, %s59
      %s76 = sphi 0, %s60
      %s80 = sphi 0, %s80
      %s82 = sphi 0, %s80
      %s83 = sphi 0, %s82
      %s97 = sphi 0, %s83
      %s101 = sphi 0, %s101
      %s103 = sphi 0, %s101
      %s104 = sphi 0, %s103
      %s118 = sphi 0, %s104
      %s124 = sphi 0, %s126
      %s127 = sphi 0, %s124
      %s128 = sphi 0, %s127
      %s144 = sphi 0, %s128
    $region4: #{tpu_custom_call.1} parent=1 // loop_header_branch
      %23 = sbr.rel (%p21) target = $region8
    $region5: #{tpu_custom_call.1} parent=1 // loop_body
      %s25 = ssub.s32 %s20, 1
      %s26 = ssub.s32 %s20, 2
      %s27 = sadd.s32 %s20, 1
      %s28 = ssub.s32 %s20, %s27
      %p29 = scmp.eq.s32.totalorder %s28, 0
      %s31 = sadd.s32 %s30, 1
      %s32 = scalar_select %p29, %s30, %s31
      %p35 = pneg %p29
      %p36 = scmp.eq.s32.totalorder %s20, 1
      %p37 = por %p35, %p36
      %p38 = scmp.ne.s32.totalorder %s30, %s33
      %p39 = scmp.eq.s32.totalorder %s20, 0
      %p40 = por %p38, %p39
      %p41 = scmp.ne.s32.totalorder %s30, %s33
      %p42 = scmp.eq.s32.totalorder %s25, 1
      %p43 = por %p41, %p42
      %p44 = scmp.ne.s32.totalorder %s33, %s34
      %p45 = scmp.eq.s32.totalorder %s25, 0
      %p46 = por %p44, %p45
      %p47 = scmp.ne.s32.totalorder %s33, %s34
      %p48 = scmp.eq.s32.totalorder %s26, 1
      %p49 = por %p47, %p48
      %p51 = scmp.ne.s32.totalorder %s34, %s50
      %p52 = scmp.eq.s32.totalorder %s26, 0
      %p53 = por %p51, %p52
      %s54 = ssub.s32 %s20, %s27
      %p55 = scmp.eq.s32.totalorder %s54, 0
      %s57 = sadd.s32 %s56, 1
      %s58 = scalar_select %p55, %s56, %s57
      %p61 = pneg %p55
      %p62 = scmp.eq.s32.totalorder %s20, 1
      %p63 = por %p61, %p62
      %p64 = scmp.ne.s32.totalorder %s56, %s59
      %p65 = scmp.eq.s32.totalorder %s20, 0
      %p66 = por %p64, %p65
      %p67 = scmp.ne.s32.totalorder %s56, %s59
      %p68 = scmp.eq.s32.totalorder %s25, 1
      %p69 = por %p67, %p68
      %p70 = scmp.ne.s32.totalorder %s59, %s60
      %p71 = scmp.eq.s32.totalorder %s25, 0
      %p72 = por %p70, %p71
      %p73 = scmp.ne.s32.totalorder %s59, %s60
      %p74 = scmp.eq.s32.totalorder %s26, 1
      %p75 = por %p73, %p74
      %p77 = scmp.ne.s32.totalorder %s60, %s76
      %p78 = scmp.eq.s32.totalorder %s26, 0
      %p79 = por %p77, %p78
      %s81 = sadd.s32 %s80, 1
      %p84 = scmp.eq.s32.totalorder %s20, 1
      %p85 = scmp.ne.s32.totalorder %s80, %s82
      %p86 = scmp.eq.s32.totalorder %s20, 0
      %p87 = por %p85, %p86
      %p88 = scmp.ne.s32.totalorder %s80, %s82
      %p89 = scmp.eq.s32.totalorder %s25, 1
      %p90 = por %p88, %p89
      %p91 = scmp.ne.s32.totalorder %s82, %s83
      %p92 = scmp.eq.s32.totalorder %s25, 0
      %p93 = por %p91, %p92
      %p94 = scmp.ne.s32.totalorder %s82, %s83
      %p95 = scmp.eq.s32.totalorder %s26, 1
      %p96 = por %p94, %p95
      %p98 = scmp.ne.s32.totalorder %s83, %s97
      %p99 = scmp.eq.s32.totalorder %s26, 0
      %p100 = por %p98, %p99
      %s102 = sadd.s32 %s101, 1
      %p105 = scmp.eq.s32.totalorder %s20, 1
      %p106 = scmp.ne.s32.totalorder %s101, %s103
      %p107 = scmp.eq.s32.totalorder %s20, 0
      %p108 = por %p106, %p107
      %p109 = scmp.ne.s32.totalorder %s101, %s103
      %p110 = scmp.eq.s32.totalorder %s25, 1
      %p111 = por %p109, %p110
      %p112 = scmp.ne.s32.totalorder %s103, %s104
      %p113 = scmp.eq.s32.totalorder %s25, 0
      %p114 = por %p112, %p113
      %p115 = scmp.ne.s32.totalorder %s103, %s104
      %p116 = scmp.eq.s32.totalorder %s26, 1
      %p117 = por %p115, %p116
      %p119 = scmp.ne.s32.totalorder %s104, %s118
      %p120 = scmp.eq.s32.totalorder %s26, 0
      %p121 = por %p119, %p120
      %s122 = ssub.s32 %s20, %s27
      %p123 = scmp.eq.s32.totalorder %s122, 0
      %s125 = sadd.s32 %s124, 1
      %s126 = scalar_select %p123, %s124, %s125
      %p129 = pneg %p123
      %p130 = scmp.eq.s32.totalorder %s20, 1
      %p131 = por %p129, %p130
      %p132 = scmp.ne.s32.totalorder %s124, %s127
      %p133 = scmp.eq.s32.totalorder %s20, 0
      %p134 = por %p132, %p133
      %p135 = scmp.ne.s32.totalorder %s124, %s127
      %p136 = scmp.eq.s32.totalorder %s25, 1
      %p137 = por %p135, %p136
      %p138 = scmp.ne.s32.totalorder %s127, %s128
      %p139 = scmp.eq.s32.totalorder %s25, 0
      %p140 = por %p138, %p139
      %p141 = scmp.ne.s32.totalorder %s127, %s128
      %p142 = scmp.eq.s32.totalorder %s26, 1
      %p143 = por %p141, %p142
      %p145 = scmp.ne.s32.totalorder %s128, %s144
      %p146 = scmp.eq.s32.totalorder %s26, 0
      %p147 = por %p145, %p146
      %p148 = scmp.le.s32.totalorder 1, %s20
      %p149 = scmp.lt.s32.totalorder %s20, 3
      %p150 = pnand %p148, %p149
      %p151 = pneg %p150
      // Predicated region
      $region9: #{tpu_custom_call.1} parent=5 // pred_check
        _
      $region10: #{tpu_custom_call.1} parent=5 // pred_check_branch
        %153 = sbr.rel (%p150) target = $region12
      $region11: #{tpu_custom_call.1} parent=5 // pred_region
        %s154 = ssub.s32 %s20, 1
        // Predicated region
        $region13: #{tpu_custom_call.1} parent=11 // pred_check
          %p155 = pneg %p93
        $region14: #{tpu_custom_call.1} parent=11 // pred_check_branch
          %157 = sbr.rel (%p155) target = $region16
        $region15: #{tpu_custom_call.1} parent=11 // pred_region
          %s159 = ssub.s32 4096, 4096
          %160 = vsyncadd [#allocation6], %s159
          %s161 = sshll.u32 [#allocation7], 4
          %s162 = int_to_ptr.vmem [resolvable:$true] %s161
          %167 = dma.hbm_to_vmem [thread:$0]  %s2, 4096, %s162, [#allocation6], 128, 128, 8
        $region16: #{tpu_custom_call.1} parent=11 // pred_fallthru
          _
        // Predicated region
        $region17: #{tpu_custom_call.1} parent=11 // pred_check
          %p168 = pneg %p114
        $region18: #{tpu_custom_call.1} parent=11 // pred_check_branch
          %170 = sbr.rel (%p168) target = $region20
        $region19: #{tpu_custom_call.1} parent=11 // pred_region
          %s172 = ssub.s32 2048, 2048
          %173 = vsyncadd [#allocation9], %s172
          %s174 = sshll.u32 [#allocation8], 4
          %s175 = int_to_ptr.vmem [resolvable:$true] %s174
          %180 = dma.hbm_to_vmem [thread:$0]  %s3, 2048, %s175, [#allocation9], 128, 128, 8
        $region20: #{tpu_custom_call.1} parent=11 // pred_fallthru
          _
      $region12: #{tpu_custom_call.1} parent=5 // pred_fallthru
        _
      %p181 = scmp.lt.s32.totalorder %s20, 2
      // Predicated region
      $region21: #{tpu_custom_call.1} parent=5 // pred_check
        %p182 = pneg %p181
      $region22: #{tpu_custom_call.1} parent=5 // pred_check_branch
        %184 = sbr.rel (%p182) target = $region24
      $region23: #{tpu_custom_call.1} parent=5 // pred_region
        // Predicated region
        $region25: #{tpu_custom_call.1} parent=23 // pred_check
          %p185 = pneg %p40
        $region26: #{tpu_custom_call.1} parent=23 // pred_check_branch
          %187 = sbr.rel (%p185) target = $region28
        $region27: #{tpu_custom_call.1} parent=23 // pred_region
          #allocation12 [shape = 'u32[6]{0}', space=smem, size = 0x18, scoped, tag = 'DMA stride descriptor']
          %s188 = sand.u32 %s30, 1
          %s189 = scalar_lea.sflag [#allocation3], %s188
          %s190 = sand.u32 %s30, 1
          %s191 = smul.addr %s190, 512
          %s192 = scalar_lea.vmem [#allocation2], %s191
          %s193 = smul.u32 16, %s20
          %s195 = ssub.s32 8192, 8192
          %196 = vsyncadd %s189, %s195
          %s197 = smul.addr %s193, 2
          %s198 = smul.addr %s197, 128
          %s199 = scalar_lea.hbm %s0, %s198
          %s201 = sshll.u32 1, 14
          %s202 = sxor.u32 4294967295, %s201
          %s204 = sld [smem:[#allocation0]]
          %s205 = sadd.s32 2, %s204
          %s207 = sshll.u32 7, 26
          %s208 = sxor.u32 4294967295, %s207
          %s209 = sand.u32 0, %s208
          %s210 = sshll.u32 %s205, 26
          %s211 = sor.u32 %s209, %s210
          %s212 = sshll.u32 %s192, 4
          %s213 = int_to_ptr.vmem [resolvable:$true] %s212
          %219 = sst [smem:[#allocation12]] 8192
          %s220 = scalar_lea.smem [#allocation12], 1
          %221 = sst [smem:[%s220]] 4096
          %s222 = scalar_lea.smem [#allocation12], 2
          %223 = sst [smem:[%s222]] 16
          %s224 = scalar_lea.smem [#allocation12], 3
          %225 = sst [smem:[%s224]] 256
          %s226 = scalar_lea.smem [#allocation12], 4
          %227 = sst [smem:[%s226]] 256
          %s228 = scalar_lea.smem [#allocation12], 5
          %229 = sst [smem:[%s228]] 16
          %231 = dma.general %s199, 8192, %s213, %s189, 131072, [#allocation12], %s211, 0
        $region28: #{tpu_custom_call.1} parent=23 // pred_fallthru
          _
        // Predicated region
        $region29: #{tpu_custom_call.1} parent=23 // pred_check
          %p232 = pneg %p66
        $region30: #{tpu_custom_call.1} parent=23 // pred_check_branch
          %234 = sbr.rel (%p232) target = $region32
        $region31: #{tpu_custom_call.1} parent=23 // pred_region
          #allocation14 [shape = 'u32[6]{0}', space=smem, size = 0x18, scoped, tag = 'DMA stride descriptor']
          %s235 = sand.u32 %s20, 1
          %s236 = scalar_lea.sflag [#allocation6], %s235
          %s237 = sand.u32 %s56, 1
          %s238 = smul.addr %s237, 256
          %s239 = scalar_lea.vmem [#allocation5], %s238
          %s240 = smul.u32 16, %s20
          %s242 = ssub.s32 4096, 4096
          %243 = vsyncadd %s236, %s242
          %s244 = smul.addr %s240, 128
          %s245 = scalar_lea.hbm %s1, %s244
          %s247 = sshll.u32 1, 14
          %s248 = sxor.u32 4294967295, %s247
          %s250 = sld [smem:[#allocation0]]
          %s251 = sadd.s32 2, %s250
          %s253 = sshll.u32 7, 26
          %s254 = sxor.u32 4294967295, %s253
          %s255 = sand.u32 0, %s254
          %s256 = sshll.u32 %s251, 26
          %s257 = sor.u32 %s255, %s256
          %s258 = sshll.u32 %s239, 4
          %s259 = int_to_ptr.vmem [resolvable:$true] %s258
          %265 = sst [smem:[#allocation14]] 4096
          %s266 = scalar_lea.smem [#allocation14], 1
          %267 = sst [smem:[%s266]] 2048
          %s268 = scalar_lea.smem [#allocation14], 2
          %269 = sst [smem:[%s268]] 16
          %s270 = scalar_lea.smem [#allocation14], 3
          %271 = sst [smem:[%s270]] 128
          %s272 = scalar_lea.smem [#allocation14], 4
          %273 = sst [smem:[%s272]] 128
          %s274 = scalar_lea.smem [#allocation14], 5
          %275 = sst [smem:[%s274]] 8
          %277 = dma.general %s245, 4096, %s259, %s236, 131072, [#allocation14], %s257, 0
        $region32: #{tpu_custom_call.1} parent=23 // pred_fallthru
          _
      $region24: #{tpu_custom_call.1} parent=5 // pred_fallthru
        _
      %p278 = scmp.le.s32.totalorder 1, %s20
      %p279 = scmp.lt.s32.totalorder %s20, 3
      %p280 = pnand %p278, %p279
      %p281 = pneg %p280
      // Predicated region
      $region33: #{tpu_custom_call.1} parent=5 // pred_check
        _
      $region34: #{tpu_custom_call.1} parent=5 // pred_check_branch
        %283 = sbr.rel (%p280) target = $region36
      $region35: #{tpu_custom_call.1} parent=5 // pred_region
        %s284 = ssub.s32 %s20, 1
        %s285 = sand.u32 %s33, 1
        %s286 = scalar_lea.sflag [#allocation3], %s285
        %s287 = sand.u32 %s33, 1
        %s288 = smul.addr %s287, 512
        %s289 = scalar_lea.vmem [#allocation2], %s288
        // Predicated region
        $region37: #{tpu_custom_call.1} parent=35 // pred_check
          %p290 = pneg %p46
        $region38: #{tpu_custom_call.1} parent=35 // pred_check_branch
          %292 = sbr.rel (%p290) target = $region40
        $region39: #{tpu_custom_call.1} parent=35 // pred_region
          %293 = dma.done %s286, 8192
        $region40: #{tpu_custom_call.1} parent=35 // pred_fallthru
          _
        %s294 = sand.u32 %s25, 1
        %s295 = scalar_lea.sflag [#allocation6], %s294
        %s296 = sand.u32 %s59, 1
        %s297 = smul.addr %s296, 256
        %s298 = scalar_lea.vmem [#allocation5], %s297
        // Predicated region
        $region41: #{tpu_custom_call.1} parent=35 // pred_check
          %p299 = pneg %p72
        $region42: #{tpu_custom_call.1} parent=35 // pred_check_branch
          %301 = sbr.rel (%p299) target = $region44
        $region43: #{tpu_custom_call.1} parent=35 // pred_region
          %302 = dma.done %s295, 4096
        $region44: #{tpu_custom_call.1} parent=35 // pred_fallthru
          _
        // Predicated region
        $region45: #{tpu_custom_call.1} parent=35 // pred_check
          %p303 = pneg %p93
        $region46: #{tpu_custom_call.1} parent=35 // pred_check_branch
          %305 = sbr.rel (%p303) target = $region48
        $region47: #{tpu_custom_call.1} parent=35 // pred_region
          %306 = dma.done [#allocation6], 4096
        $region48: #{tpu_custom_call.1} parent=35 // pred_fallthru
          _
        // Predicated region
        $region49: #{tpu_custom_call.1} parent=35 // pred_check
          %p307 = pneg %p114
        $region50: #{tpu_custom_call.1} parent=35 // pred_check_branch
          %309 = sbr.rel (%p307) target = $region52
        $region51: #{tpu_custom_call.1} parent=35 // pred_region
          %310 = dma.done [#allocation9], 2048
        $region52: #{tpu_custom_call.1} parent=35 // pred_fallthru
          _
        %s311 = sand.u32 %s33, 1
        %s312 = scalar_lea.sflag [#allocation3], %s311
        %s313 = sand.u32 %s33, 1
        %s314 = smul.addr %s313, 512
        %s315 = scalar_lea.vmem [#allocation2], %s314
        %p316 = pneg %p46
        %p317 = pneg %p43
        %s318 = sand.u32 %s25, 1
        %s319 = scalar_lea.sflag [#allocation6], %s318
        %s320 = sand.u32 %s59, 1
        %s321 = smul.addr %s320, 256
        %s322 = scalar_lea.vmem [#allocation5], %s321
        %p323 = pneg %p72
        %p324 = pneg %p69
        %p325 = pneg %p93
        %p326 = pneg %p90
        %p327 = pneg %p114
        %p328 = pneg %p111
        %p329 = pneg %p140
        %p330 = pneg %p137
        %s331 = sand.u32 %s127, 1
        %s332 = scalar_lea.sflag [#allocation4], %s331
        %s333 = sand.u32 %s127, 1
        %s334 = smul.addr %s333, 128
        %s335 = scalar_lea.vmem [#allocation10], %s334
        %s336 = smul.u32 16, %s25
        %s337 = smul.u32 16, %s25
        %s338 = smul.u32 16, %s25
        %v339 = vld [vmem:[%s289] sm:$0xff]
        %v340 = vld [vmem:[%s289 + $0x8] sm:$0xff]
        %v341 = vld [vmem:[%s289 + $0x10] sm:$0xff]
        %v342 = vld [vmem:[%s289 + $0x18] sm:$0xff]
        %v343 = vld [vmem:[%s289 + $0x20] sm:$0xff]
        %v344 = vld [vmem:[%s289 + $0x28] sm:$0xff]
        %v345 = vld [vmem:[%s289 + $0x30] sm:$0xff]
        %v346 = vld [vmem:[%s289 + $0x38] sm:$0xff]
        %v347 = vld [vmem:[%s289 + $0x40] sm:$0xff]
        %v348 = vld [vmem:[%s289 + $0x48] sm:$0xff]
        %v349 = vld [vmem:[%s289 + $0x50] sm:$0xff]
        %v350 = vld [vmem:[%s289 + $0x58] sm:$0xff]
        %v351 = vld [vmem:[%s289 + $0x60] sm:$0xff]
        %v352 = vld [vmem:[%s289 + $0x68] sm:$0xff]
        %v353 = vld [vmem:[%s289 + $0x70] sm:$0xff]
        %v354 = vld [vmem:[%s289 + $0x78] sm:$0xff]
        %v355 = vld [vmem:[%s289 + $0x80] sm:$0xff]
        %v356 = vld [vmem:[%s289 + $0x88] sm:$0xff]
        %v357 = vld [vmem:[%s289 + $0x90] sm:$0xff]
        %v358 = vld [vmem:[%s289 + $0x98] sm:$0xff]
        %v359 = vld [vmem:[%s289 + $0xa0] sm:$0xff]
        %v360 = vld [vmem:[%s289 + $0xa8] sm:$0xff]
        %v361 = vld [vmem:[%s289 + $0xb0] sm:$0xff]
        %v362 = vld [vmem:[%s289 + $0xb8] sm:$0xff]
        %v363 = vld [vmem:[%s289 + $0xc0] sm:$0xff]
        %v364 = vld [vmem:[%s289 + $0xc8] sm:$0xff]
        %v365 = vld [vmem:[%s289 + $0xd0] sm:$0xff]
        %v366 = vld [vmem:[%s289 + $0xd8] sm:$0xff]
        %v367 = vld [vmem:[%s289 + $0xe0] sm:$0xff]
        %v368 = vld [vmem:[%s289 + $0xe8] sm:$0xff]
        %v369 = vld [vmem:[%s289 + $0xf0] sm:$0xff]
        %v370 = vld [vmem:[%s289 + $0xf8] sm:$0xff]
        %v371 = vld [vmem:[%s289 + $0x100] sm:$0xff]
        %v372 = vld [vmem:[%s289 + $0x108] sm:$0xff]
        %v373 = vld [vmem:[%s289 + $0x110] sm:$0xff]
        %v374 = vld [vmem:[%s289 + $0x118] sm:$0xff]
        %v375 = vld [vmem:[%s289 + $0x120] sm:$0xff]
        %v376 = vld [vmem:[%s289 + $0x128] sm:$0xff]
        %v377 = vld [vmem:[%s289 + $0x130] sm:$0xff]
        %v378 = vld [vmem:[%s289 + $0x138] sm:$0xff]
        %v379 = vld [vmem:[%s289 + $0x140] sm:$0xff]
        %v380 = vld [vmem:[%s289 + $0x148] sm:$0xff]
        %v381 = vld [vmem:[%s289 + $0x150] sm:$0xff]
        %v382 = vld [vmem:[%s289 + $0x158] sm:$0xff]
        %v383 = vld [vmem:[%s289 + $0x160] sm:$0xff]
        %v384 = vld [vmem:[%s289 + $0x168] sm:$0xff]
        %v385 = vld [vmem:[%s289 + $0x170] sm:$0xff]
        %v386 = vld [vmem:[%s289 + $0x178] sm:$0xff]
        %v387 = vld [vmem:[%s289 + $0x180] sm:$0xff]
        %v388 = vld [vmem:[%s289 + $0x188] sm:$0xff]
        %v389 = vld [vmem:[%s289 + $0x190] sm:$0xff]
        %v390 = vld [vmem:[%s289 + $0x198] sm:$0xff]
        %v391 = vld [vmem:[%s289 + $0x1a0] sm:$0xff]
        %v392 = vld [vmem:[%s289 + $0x1a8] sm:$0xff]
        %v393 = vld [vmem:[%s289 + $0x1b0] sm:$0xff]
        %v394 = vld [vmem:[%s289 + $0x1b8] sm:$0xff]
        %v395 = vld [vmem:[%s289 + $0x1c0] sm:$0xff]
        %v396 = vld [vmem:[%s289 + $0x1c8] sm:$0xff]
        %v397 = vld [vmem:[%s289 + $0x1d0] sm:$0xff]
        %v398 = vld [vmem:[%s289 + $0x1d8] sm:$0xff]
        %v399 = vld [vmem:[%s289 + $0x1e0] sm:$0xff]
        %v400 = vld [vmem:[%s289 + $0x1e8] sm:$0xff]
        %v401 = vld [vmem:[%s289 + $0x1f0] sm:$0xff]
        %v402 = vld [vmem:[%s289 + $0x1f8] sm:$0xff]
        %v403 = vld [vmem:[#allocation7] sm:$0xff]
        %v404 = vld [vmem:[#allocation7 + $0x8] sm:$0xff]
        %v405 = vld [vmem:[#allocation7 + $0x10] sm:$0xff]
        %v406 = vld [vmem:[#allocation7 + $0x18] sm:$0xff]
        %v407 = vld [vmem:[#allocation7 + $0x20] sm:$0xff]
        %v408 = vld [vmem:[#allocation7 + $0x28] sm:$0xff]
        %v409 = vld [vmem:[#allocation7 + $0x30] sm:$0xff]
        %v410 = vld [vmem:[#allocation7 + $0x38] sm:$0xff]
        %v411 = vld [vmem:[#allocation7 + $0x40] sm:$0xff]
        %v412 = vld [vmem:[#allocation7 + $0x48] sm:$0xff]
        %v413 = vld [vmem:[#allocation7 + $0x50] sm:$0xff]
        %v414 = vld [vmem:[#allocation7 + $0x58] sm:$0xff]
        %v415 = vld [vmem:[#allocation7 + $0x60] sm:$0xff]
        %v416 = vld [vmem:[#allocation7 + $0x68] sm:$0xff]
        %v417 = vld [vmem:[#allocation7 + $0x70] sm:$0xff]
        %v418 = vld [vmem:[#allocation7 + $0x78] sm:$0xff]
        %v419 = vld [vmem:[#allocation7 + $0x80] sm:$0xff]
        %v420 = vld [vmem:[#allocation7 + $0x88] sm:$0xff]
        %v421 = vld [vmem:[#allocation7 + $0x90] sm:$0xff]
        %v422 = vld [vmem:[#allocation7 + $0x98] sm:$0xff]
        %v423 = vld [vmem:[#allocation7 + $0xa0] sm:$0xff]
        %v424 = vld [vmem:[#allocation7 + $0xa8] sm:$0xff]
        %v425 = vld [vmem:[#allocation7 + $0xb0] sm:$0xff]
        %v426 = vld [vmem:[#allocation7 + $0xb8] sm:$0xff]
        %v427 = vld [vmem:[#allocation7 + $0xc0] sm:$0xff]
        %v428 = vld [vmem:[#allocation7 + $0xc8] sm:$0xff]
        %v429 = vld [vmem:[#allocation7 + $0xd0] sm:$0xff]
        %v430 = vld [vmem:[#allocation7 + $0xd8] sm:$0xff]
        %v431 = vld [vmem:[#allocation7 + $0xe0] sm:$0xff]
        %v432 = vld [vmem:[#allocation7 + $0xe8] sm:$0xff]
        %v433 = vld [vmem:[#allocation7 + $0xf0] sm:$0xff]
        %v434 = vld [vmem:[#allocation7 + $0xf8] sm:$0xff]
        %435 = vmatprep.subr.mxu0 0.0
        %436 = vmatpush1.msra.mxu0 %v418
        %437 = vmatprep.subr.mxu0 0.0
        %438 = vmatpush1.msra.mxu0 %v417
        %439 = vmatprep.subr.mxu0 0.0
        %440 = vmatpush1.msra.mxu0 %v416
        %441 = vmatprep.subr.mxu0 0.0
        %442 = vmatpush1.msra.mxu0 %v415
        %443 = vmatprep.subr.mxu0 0.0
        %444 = vmatpush1.msra.mxu0 %v414
        %445 = vmatprep.subr.mxu0 0.0
        %446 = vmatpush1.msra.mxu0 %v413
        %447 = vmatprep.subr.mxu0 0.0
        %448 = vmatpush1.msra.mxu0 %v412
        %449 = vmatprep.subr.mxu0 0.0
        %450 = vmatpush1.msra.mxu0 %v411
        %451 = vmatprep.subr.mxu0 0.0
        %452 = vmatpush1.msra.mxu0 %v410
        %453 = vmatprep.subr.mxu0 0.0
        %454 = vmatpush1.msra.mxu0 %v409
        %455 = vmatprep.subr.mxu0 0.0
        %456 = vmatpush1.msra.mxu0 %v408
        %457 = vmatprep.subr.mxu0 0.0
        %458 = vmatpush1.msra.mxu0 %v407
        %459 = vmatprep.subr.mxu0 0.0
        %460 = vmatpush1.msra.mxu0 %v406
        %461 = vmatprep.subr.mxu0 0.0
        %462 = vmatpush1.msra.mxu0 %v405
        %463 = vmatprep.subr.mxu0 0.0
        %464 = vmatpush1.msra.mxu0 %v404
        %465 = vmatprep.subr.mxu0 0.0
        %466 = vmatpush1.msra.mxu0 %v403
        %467 = vmatprep.subr.mxu0 0.0
        %468 = vmatpush2.msra.mxu0 %v434
        %469 = vmatprep.subr.mxu0 0.0
        %470 = vmatpush2.msra.mxu0 %v433
        %471 = vmatprep.subr.mxu0 0.0
        %472 = vmatpush2.msra.mxu0 %v432
        %473 = vmatprep.subr.mxu0 0.0
        %474 = vmatpush2.msra.mxu0 %v431
        %475 = vmatprep.subr.mxu0 0.0
        %476 = vmatpush2.msra.mxu0 %v430
        %477 = vmatprep.subr.mxu0 0.0
        %478 = vmatpush2.msra.mxu0 %v429
        %479 = vmatprep.subr.mxu0 0.0
        %480 = vmatpush2.msra.mxu0 %v428
        %481 = vmatprep.subr.mxu0 0.0
        %482 = vmatpush2.msra.mxu0 %v427
        %483 = vmatprep.subr.mxu0 0.0
        %484 = vmatpush2.msra.mxu0 %v426
        %485 = vmatprep.subr.mxu0 0.0
        %486 = vmatpush2.msra.mxu0 %v425
        %487 = vmatprep.subr.mxu0 0.0
        %488 = vmatpush2.msra.mxu0 %v424
        %489 = vmatprep.subr.mxu0 0.0
        %490 = vmatpush2.msra.mxu0 %v423
        %491 = vmatprep.subr.mxu0 0.0
        %492 = vmatpush2.msra.mxu0 %v422
        %493 = vmatprep.subr.mxu0 0.0
        %494 = vmatpush2.msra.mxu0 %v421
        %495 = vmatprep.subr.mxu0 0.0
        %496 = vmatpush2.msra.mxu0 %v420
        %497 = vmatprep.subr.mxu0 0.0
        %498 = vmatpush2.msra.mxu0 %v419
        %499 = vmatprep.mubr.f32.mxu0 %v340
        %500 = vmatmul.mubr.f32.gmra.mxu0 %v339
        %v501 = vpop.f32.mrf.mxu0
        %v502 = vadd.f32 0.0, %v501
        %v503 = vpop.f32.mrf.mxu0
        %504 = vmatprep.mubr.f32.mxu0 %v342
        %505 = vmatmul.mubr.f32.gmra.mxu0 %v341
        %v506 = vpop.f32.mrf.mxu0
        %v507 = vadd.f32 0.0, %v506
        %v508 = vpop.f32.mrf.mxu0
        %509 = vmatprep.mubr.f32.mxu0 %v344
        %510 = vmatmul.mubr.f32.gmra.mxu0 %v343
        %v511 = vpop.f32.mrf.mxu0
        %v512 = vadd.f32 0.0, %v511
        %v513 = vpop.f32.mrf.mxu0
        %514 = vmatprep.mubr.f32.mxu0 %v346
        %515 = vmatmul.mubr.f32.gmra.mxu0 %v345
        %v516 = vpop.f32.mrf.mxu0
        %v517 = vadd.f32 0.0, %v516
        %v518 = vpop.f32.mrf.mxu0
        %519 = vmatprep.mubr.f32.mxu0 %v348
        %520 = vmatmul.mubr.f32.gmra.mxu0 %v347
        %v521 = vpop.f32.mrf.mxu0
        %v522 = vadd.f32 0.0, %v521
        %v523 = vpop.f32.mrf.mxu0
        %524 = vmatprep.mubr.f32.mxu0 %v350
        %525 = vmatmul.mubr.f32.gmra.mxu0 %v349
        %v526 = vpop.f32.mrf.mxu0
        %v527 = vadd.f32 0.0, %v526
        %v528 = vpop.f32.mrf.mxu0
        %529 = vmatprep.mubr.f32.mxu0 %v352
        %530 = vmatmul.mubr.f32.gmra.mxu0 %v351
        %v531 = vpop.f32.mrf.mxu0
        %v532 = vadd.f32 0.0, %v531
        %v533 = vpop.f32.mrf.mxu0
        %534 = vmatprep.mubr.f32.mxu0 %v354
        %535 = vmatmul.mubr.f32.gmra.mxu0 %v353
        %v536 = vpop.f32.mrf.mxu0
        %v537 = vadd.f32 0.0, %v536
        %v538 = vpop.f32.mrf.mxu0
        %539 = vmatprep.mubr.f32.mxu0 %v356
        %540 = vmatmul.mubr.f32.gmra.mxu0 %v355
        %v541 = vpop.f32.mrf.mxu0
        %v542 = vadd.f32 0.0, %v541
        %v543 = vpop.f32.mrf.mxu0
        %544 = vmatprep.mubr.f32.mxu0 %v358
        %545 = vmatmul.mubr.f32.gmra.mxu0 %v357
        %v546 = vpop.f32.mrf.mxu0
        %v547 = vadd.f32 0.0, %v546
        %v548 = vpop.f32.mrf.mxu0
        %549 = vmatprep.mubr.f32.mxu0 %v360
        %550 = vmatmul.mubr.f32.gmra.mxu0 %v359
        %v551 = vpop.f32.mrf.mxu0
        %v552 = vadd.f32 0.0, %v551
        %v553 = vpop.f32.mrf.mxu0
        %554 = vmatprep.mubr.f32.mxu0 %v362
        %555 = vmatmul.mubr.f32.gmra.mxu0 %v361
        %v556 = vpop.f32.mrf.mxu0
        %v557 = vadd.f32 0.0, %v556
        %v558 = vpop.f32.mrf.mxu0
        %559 = vmatprep.mubr.f32.mxu0 %v364
        %560 = vmatmul.mubr.f32.gmra.mxu0 %v363
        %v561 = vpop.f32.mrf.mxu0
        %v562 = vadd.f32 0.0, %v561
        %v563 = vpop.f32.mrf.mxu0
        %564 = vmatprep.mubr.f32.mxu0 %v366
        %565 = vmatmul.mubr.f32.gmra.mxu0 %v365
        %v566 = vpop.f32.mrf.mxu0
        %v567 = vadd.f32 0.0, %v566
        %v568 = vpop.f32.mrf.mxu0
        %569 = vmatprep.mubr.f32.mxu0 %v368
        %570 = vmatmul.mubr.f32.gmra.mxu0 %v367
        %v571 = vpop.f32.mrf.mxu0
        %v572 = vadd.f32 0.0, %v571
        %v573 = vpop.f32.mrf.mxu0
        %574 = vmatprep.mubr.f32.mxu0 %v370
        %575 = vmatmul.mubr.f32.gmra.mxu0 %v369
        %v576 = vpop.f32.mrf.mxu0
        %v577 = vadd.f32 0.0, %v576
        %v578 = vpop.f32.mrf.mxu0
        %579 = vmatprep.mubr.f32.mxu0 %v372
        %580 = vmatmul.mubr.f32.gmra.mxu0 %v371
        %v581 = vpop.f32.mrf.mxu0
        %v582 = vadd.f32 0.0, %v581
        %v583 = vpop.f32.mrf.mxu0
        %584 = vmatprep.mubr.f32.mxu0 %v374
        %585 = vmatmul.mubr.f32.gmra.mxu0 %v373
        %v586 = vpop.f32.mrf.mxu0
        %v587 = vadd.f32 0.0, %v586
        %v588 = vpop.f32.mrf.mxu0
        %589 = vmatprep.mubr.f32.mxu0 %v376
        %590 = vmatmul.mubr.f32.gmra.mxu0 %v375
        %v591 = vpop.f32.mrf.mxu0
        %v592 = vadd.f32 0.0, %v591
        %v593 = vpop.f32.mrf.mxu0
        %594 = vmatprep.mubr.f32.mxu0 %v378
        %595 = vmatmul.mubr.f32.gmra.mxu0 %v377
        %v596 = vpop.f32.mrf.mxu0
        %v597 = vadd.f32 0.0, %v596
        %v598 = vpop.f32.mrf.mxu0
        %599 = vmatprep.mubr.f32.mxu0 %v380
        %600 = vmatmul.mubr.f32.gmra.mxu0 %v379
        %v601 = vpop.f32.mrf.mxu0
        %v602 = vadd.f32 0.0, %v601
        %v603 = vpop.f32.mrf.mxu0
        %604 = vmatprep.mubr.f32.mxu0 %v382
        %605 = vmatmul.mubr.f32.gmra.mxu0 %v381
        %v606 = vpop.f32.mrf.mxu0
        %v607 = vadd.f32 0.0, %v606
        %v608 = vpop.f32.mrf.mxu0
        %609 = vmatprep.mubr.f32.mxu0 %v384
        %610 = vmatmul.mubr.f32.gmra.mxu0 %v383
        %v611 = vpop.f32.mrf.mxu0
        %v612 = vadd.f32 0.0, %v611
        %v613 = vpop.f32.mrf.mxu0
        %614 = vmatprep.mubr.f32.mxu0 %v386
        %615 = vmatmul.mubr.f32.gmra.mxu0 %v385
        %v616 = vpop.f32.mrf.mxu0
        %v617 = vadd.f32 0.0, %v616
        %v618 = vpop.f32.mrf.mxu0
        %619 = vmatprep.mubr.f32.mxu0 %v388
        %620 = vmatmul.mubr.f32.gmra.mxu0 %v387
        %v621 = vpop.f32.mrf.mxu0
        %v622 = vadd.f32 0.0, %v621
        %v623 = vpop.f32.mrf.mxu0
        %624 = vmatprep.mubr.f32.mxu0 %v390
        %625 = vmatmul.mubr.f32.gmra.mxu0 %v389
        %v626 = vpop.f32.mrf.mxu0
        %v627 = vadd.f32 0.0, %v626
        %v628 = vpop.f32.mrf.mxu0
        %629 = vmatprep.mubr.f32.mxu0 %v392
        %630 = vmatmul.mubr.f32.gmra.mxu0 %v391
        %v631 = vpop.f32.mrf.mxu0
        %v632 = vadd.f32 0.0, %v631
        %v633 = vpop.f32.mrf.mxu0
        %634 = vmatprep.mubr.f32.mxu0 %v394
        %635 = vmatmul.mubr.f32.gmra.mxu0 %v393
        %v636 = vpop.f32.mrf.mxu0
        %v637 = vadd.f32 0.0, %v636
        %v638 = vpop.f32.mrf.mxu0
        %639 = vmatprep.mubr.f32.mxu0 %v396
        %640 = vmatmul.mubr.f32.gmra.mxu0 %v395
        %v641 = vpop.f32.mrf.mxu0
        %v642 = vadd.f32 0.0, %v641
        %v643 = vpop.f32.mrf.mxu0
        %644 = vmatprep.mubr.f32.mxu0 %v398
        %645 = vmatmul.mubr.f32.gmra.mxu0 %v397
        %v646 = vpop.f32.mrf.mxu0
        %v647 = vadd.f32 0.0, %v646
        %v648 = vpop.f32.mrf.mxu0
        %649 = vmatprep.mubr.f32.mxu0 %v400
        %650 = vmatmul.mubr.f32.gmra.mxu0 %v399
        %v651 = vpop.f32.mrf.mxu0
        %v652 = vadd.f32 0.0, %v651
        %v653 = vpop.f32.mrf.mxu0
        %654 = vmatprep.mubr.f32.mxu0 %v402
        %655 = vmatmul.mubr.f32.gmra.mxu0 %v401
        %v656 = vpop.f32.mrf.mxu0
        %v657 = vadd.f32 0.0, %v656
        %v658 = vpop.f32.mrf.mxu0
        %659 = vdwg.mxu0
        %v660 = vmax.f32 %v502, 0.0
        %v661 = vmax.f32 %v507, 0.0
        %v662 = vmax.f32 %v512, 0.0
        %v663 = vmax.f32 %v517, 0.0
        %v664 = vmax.f32 %v522, 0.0
        %v665 = vmax.f32 %v527, 0.0
        %v666 = vmax.f32 %v532, 0.0
        %v667 = vmax.f32 %v537, 0.0
        %v668 = vmax.f32 %v542, 0.0
        %v669 = vmax.f32 %v547, 0.0
        %v670 = vmax.f32 %v552, 0.0
        %v671 = vmax.f32 %v557, 0.0
        %v672 = vmax.f32 %v562, 0.0
        %v673 = vmax.f32 %v567, 0.0
        %v674 = vmax.f32 %v572, 0.0
        %v675 = vmax.f32 %v577, 0.0
        %v676 = vmax.f32 %v582, 0.0
        %v677 = vmax.f32 %v587, 0.0
        %v678 = vmax.f32 %v592, 0.0
        %v679 = vmax.f32 %v597, 0.0
        %v680 = vmax.f32 %v602, 0.0
        %v681 = vmax.f32 %v607, 0.0
        %v682 = vmax.f32 %v612, 0.0
        %v683 = vmax.f32 %v617, 0.0
        %v684 = vmax.f32 %v622, 0.0
        %v685 = vmax.f32 %v627, 0.0
        %v686 = vmax.f32 %v632, 0.0
        %v687 = vmax.f32 %v637, 0.0
        %v688 = vmax.f32 %v642, 0.0
        %v689 = vmax.f32 %v647, 0.0
        %v690 = vmax.f32 %v652, 0.0
        %v691 = vmax.f32 %v657, 0.0
        %v692 = vmin.f32 %v660, %v676
        %v693 = vmin.f32 %v661, %v677
        %v694 = vmin.f32 %v662, %v678
        %v695 = vmin.f32 %v663, %v679
        %v696 = vmin.f32 %v664, %v680
        %v697 = vmin.f32 %v665, %v681
        %v698 = vmin.f32 %v666, %v682
        %v699 = vmin.f32 %v667, %v683
        %v700 = vmin.f32 %v668, %v684
        %v701 = vmin.f32 %v669, %v685
        %v702 = vmin.f32 %v670, %v686
        %v703 = vmin.f32 %v671, %v687
        %v704 = vmin.f32 %v672, %v688
        %v705 = vmin.f32 %v673, %v689
        %v706 = vmin.f32 %v674, %v690
        %v707 = vmin.f32 %v675, %v691
        %v708 = vld [vmem:[#allocation8] sm:$0xff]
        %v709 = vld [vmem:[#allocation8 + $0x8] sm:$0xff]
        %v710 = vld [vmem:[#allocation8 + $0x10] sm:$0xff]
        %v711 = vld [vmem:[#allocation8 + $0x18] sm:$0xff]
        %v712 = vld [vmem:[#allocation8 + $0x20] sm:$0xff]
        %v713 = vld [vmem:[#allocation8 + $0x28] sm:$0xff]
        %v714 = vld [vmem:[#allocation8 + $0x30] sm:$0xff]
        %v715 = vld [vmem:[#allocation8 + $0x38] sm:$0xff]
        %v716 = vld [vmem:[#allocation8 + $0x40] sm:$0xff]
        %v717 = vld [vmem:[#allocation8 + $0x48] sm:$0xff]
        %v718 = vld [vmem:[#allocation8 + $0x50] sm:$0xff]
        %v719 = vld [vmem:[#allocation8 + $0x58] sm:$0xff]
        %v720 = vld [vmem:[#allocation8 + $0x60] sm:$0xff]
        %v721 = vld [vmem:[#allocation8 + $0x68] sm:$0xff]
        %v722 = vld [vmem:[#allocation8 + $0x70] sm:$0xff]
        %v723 = vld [vmem:[#allocation8 + $0x78] sm:$0xff]
        %724 = vmatprep.subr.mxu0 0.0
        %725 = vmatpush1.msra.mxu0 %v723
        %726 = vmatprep.subr.mxu0 0.0
        %727 = vmatpush1.msra.mxu0 %v722
        %728 = vmatprep.subr.mxu0 0.0
        %729 = vmatpush1.msra.mxu0 %v721
        %730 = vmatprep.subr.mxu0 0.0
        %731 = vmatpush1.msra.mxu0 %v720
        %732 = vmatprep.subr.mxu0 0.0
        %733 = vmatpush1.msra.mxu0 %v719
        %734 = vmatprep.subr.mxu0 0.0
        %735 = vmatpush1.msra.mxu0 %v718
        %736 = vmatprep.subr.mxu0 0.0
        %737 = vmatpush1.msra.mxu0 %v717
        %738 = vmatprep.subr.mxu0 0.0
        %739 = vmatpush1.msra.mxu0 %v716
        %740 = vmatprep.subr.mxu0 0.0
        %741 = vmatpush1.msra.mxu0 %v715
        %742 = vmatprep.subr.mxu0 0.0
        %743 = vmatpush1.msra.mxu0 %v714
        %744 = vmatprep.subr.mxu0 0.0
        %745 = vmatpush1.msra.mxu0 %v713
        %746 = vmatprep.subr.mxu0 0.0
        %747 = vmatpush1.msra.mxu0 %v712
        %748 = vmatprep.subr.mxu0 0.0
        %749 = vmatpush1.msra.mxu0 %v711
        %750 = vmatprep.subr.mxu0 0.0
        %751 = vmatpush1.msra.mxu0 %v710
        %752 = vmatprep.subr.mxu0 0.0
        %753 = vmatpush1.msra.mxu0 %v709
        %754 = vmatprep.subr.mxu0 0.0
        %755 = vmatpush1.msra.mxu0 %v708
        %756 = vmatprep.subr.mxu0 0.0
        %757 = vmatpush2.msra.mxu0 0.0
        %758 = vmatprep.subr.mxu0 0.0
        %759 = vmatpush2.msra.mxu0 0.0
        %760 = vmatprep.subr.mxu0 0.0
        %761 = vmatpush2.msra.mxu0 0.0
        %762 = vmatprep.subr.mxu0 0.0
        %763 = vmatpush2.msra.mxu0 0.0
        %764 = vmatprep.subr.mxu0 0.0
        %765 = vmatpush2.msra.mxu0 0.0
        %766 = vmatprep.subr.mxu0 0.0
        %767 = vmatpush2.msra.mxu0 0.0
        %768 = vmatprep.subr.mxu0 0.0
        %769 = vmatpush2.msra.mxu0 0.0
        %770 = vmatprep.subr.mxu0 0.0
        %771 = vmatpush2.msra.mxu0 0.0
        %772 = vmatprep.subr.mxu0 0.0
        %773 = vmatpush2.msra.mxu0 0.0
        %774 = vmatprep.subr.mxu0 0.0
        %775 = vmatpush2.msra.mxu0 0.0
        %776 = vmatprep.subr.mxu0 0.0
        %777 = vmatpush2.msra.mxu0 0.0
        %778 = vmatprep.subr.mxu0 0.0
        %779 = vmatpush2.msra.mxu0 0.0
        %780 = vmatprep.subr.mxu0 0.0
        %781 = vmatpush2.msra.mxu0 0.0
        %782 = vmatprep.subr.mxu0 0.0
        %783 = vmatpush2.msra.mxu0 0.0
        %784 = vmatprep.subr.mxu0 0.0
        %785 = vmatpush2.msra.mxu0 0.0
        %786 = vmatprep.subr.mxu0 0.0
        %787 = vmatpush2.msra.mxu0 0.0
        %788 = vmatprep.mubr.f32.mxu0 0.0
        %789 = vmatmul.mubr.f32.gmra.mxu0 %v692
        %v790 = vpop.f32.mrf.mxu0
        %v791 = vadd.f32 0.0, %v790
        %v792 = vpop.f32.mrf.mxu0
        %793 = vmatprep.mubr.f32.mxu0 0.0
        %794 = vmatmul.mubr.f32.gmra.mxu0 %v693
        %v795 = vpop.f32.mrf.mxu0
        %v796 = vadd.f32 0.0, %v795
        %v797 = vpop.f32.mrf.mxu0
        %798 = vmatprep.mubr.f32.mxu0 0.0
        %799 = vmatmul.mubr.f32.gmra.mxu0 %v694
        %v800 = vpop.f32.mrf.mxu0
        %v801 = vadd.f32 0.0, %v800
        %v802 = vpop.f32.mrf.mxu0
        %803 = vmatprep.mubr.f32.mxu0 0.0
        %804 = vmatmul.mubr.f32.gmra.mxu0 %v695
        %v805 = vpop.f32.mrf.mxu0
        %v806 = vadd.f32 0.0, %v805
        %v807 = vpop.f32.mrf.mxu0
        %808 = vmatprep.mubr.f32.mxu0 0.0
        %809 = vmatmul.mubr.f32.gmra.mxu0 %v696
        %v810 = vpop.f32.mrf.mxu0
        %v811 = vadd.f32 0.0, %v810
        %v812 = vpop.f32.mrf.mxu0
        %813 = vmatprep.mubr.f32.mxu0 0.0
        %814 = vmatmul.mubr.f32.gmra.mxu0 %v697
        %v815 = vpop.f32.mrf.mxu0
        %v816 = vadd.f32 0.0, %v815
        %v817 = vpop.f32.mrf.mxu0
        %818 = vmatprep.mubr.f32.mxu0 0.0
        %819 = vmatmul.mubr.f32.gmra.mxu0 %v698
        %v820 = vpop.f32.mrf.mxu0
        %v821 = vadd.f32 0.0, %v820
        %v822 = vpop.f32.mrf.mxu0
        %823 = vmatprep.mubr.f32.mxu0 0.0
        %824 = vmatmul.mubr.f32.gmra.mxu0 %v699
        %v825 = vpop.f32.mrf.mxu0
        %v826 = vadd.f32 0.0, %v825
        %v827 = vpop.f32.mrf.mxu0
        %828 = vmatprep.mubr.f32.mxu0 0.0
        %829 = vmatmul.mubr.f32.gmra.mxu0 %v700
        %v830 = vpop.f32.mrf.mxu0
        %v831 = vadd.f32 0.0, %v830
        %v832 = vpop.f32.mrf.mxu0
        %833 = vmatprep.mubr.f32.mxu0 0.0
        %834 = vmatmul.mubr.f32.gmra.mxu0 %v701
        %v835 = vpop.f32.mrf.mxu0
        %v836 = vadd.f32 0.0, %v835
        %v837 = vpop.f32.mrf.mxu0
        %838 = vmatprep.mubr.f32.mxu0 0.0
        %839 = vmatmul.mubr.f32.gmra.mxu0 %v702
        %v840 = vpop.f32.mrf.mxu0
        %v841 = vadd.f32 0.0, %v840
        %v842 = vpop.f32.mrf.mxu0
        %843 = vmatprep.mubr.f32.mxu0 0.0
        %844 = vmatmul.mubr.f32.gmra.mxu0 %v703
        %v845 = vpop.f32.mrf.mxu0
        %v846 = vadd.f32 0.0, %v845
        %v847 = vpop.f32.mrf.mxu0
        %848 = vmatprep.mubr.f32.mxu0 0.0
        %849 = vmatmul.mubr.f32.gmra.mxu0 %v704
        %v850 = vpop.f32.mrf.mxu0
        %v851 = vadd.f32 0.0, %v850
        %v852 = vpop.f32.mrf.mxu0
        %853 = vmatprep.mubr.f32.mxu0 0.0
        %854 = vmatmul.mubr.f32.gmra.mxu0 %v705
        %v855 = vpop.f32.mrf.mxu0
        %v856 = vadd.f32 0.0, %v855
        %v857 = vpop.f32.mrf.mxu0
        %858 = vmatprep.mubr.f32.mxu0 0.0
        %859 = vmatmul.mubr.f32.gmra.mxu0 %v706
        %v860 = vpop.f32.mrf.mxu0
        %v861 = vadd.f32 0.0, %v860
        %v862 = vpop.f32.mrf.mxu0
        %863 = vmatprep.mubr.f32.mxu0 0.0
        %864 = vmatmul.mubr.f32.gmra.mxu0 %v707
        %v865 = vpop.f32.mrf.mxu0
        %v866 = vadd.f32 0.0, %v865
        %v867 = vpop.f32.mrf.mxu0
        %868 = vdwg.mxu0
        %v869 = vld [vmem:[%s298] sm:$0xff]
        %v870 = vld [vmem:[%s298 + $0x8] sm:$0xff]
        %v871 = vld [vmem:[%s298 + $0x10] sm:$0xff]
        %v872 = vld [vmem:[%s298 + $0x18] sm:$0xff]
        %v873 = vld [vmem:[%s298 + $0x20] sm:$0xff]
        %v874 = vld [vmem:[%s298 + $0x28] sm:$0xff]
        %v875 = vld [vmem:[%s298 + $0x30] sm:$0xff]
        %v876 = vld [vmem:[%s298 + $0x38] sm:$0xff]
        %v877 = vld [vmem:[%s298 + $0x40] sm:$0xff]
        %v878 = vld [vmem:[%s298 + $0x48] sm:$0xff]
        %v879 = vld [vmem:[%s298 + $0x50] sm:$0xff]
        %v880 = vld [vmem:[%s298 + $0x58] sm:$0xff]
        %v881 = vld [vmem:[%s298 + $0x60] sm:$0xff]
        %v882 = vld [vmem:[%s298 + $0x68] sm:$0xff]
        %v883 = vld [vmem:[%s298 + $0x70] sm:$0xff]
        %v884 = vld [vmem:[%s298 + $0x78] sm:$0xff]
        %s885 = scalar_lea.vmem %s298, 128 [#allocation5]
        %v886 = vld [vmem:[%s885] sm:$0xff]
        %v887 = vld [vmem:[%s885 + $0x8] sm:$0xff]
        %v888 = vld [vmem:[%s885 + $0x10] sm:$0xff]
        %v889 = vld [vmem:[%s885 + $0x18] sm:$0xff]
        %v890 = vld [vmem:[%s885 + $0x20] sm:$0xff]
        %v891 = vld [vmem:[%s885 + $0x28] sm:$0xff]
        %v892 = vld [vmem:[%s885 + $0x30] sm:$0xff]
        %v893 = vld [vmem:[%s885 + $0x38] sm:$0xff]
        %v894 = vld [vmem:[%s885 + $0x40] sm:$0xff]
        %v895 = vld [vmem:[%s885 + $0x48] sm:$0xff]
        %v896 = vld [vmem:[%s885 + $0x50] sm:$0xff]
        %v897 = vld [vmem:[%s885 + $0x58] sm:$0xff]
        %v898 = vld [vmem:[%s885 + $0x60] sm:$0xff]
        %v899 = vld [vmem:[%s885 + $0x68] sm:$0xff]
        %v900 = vld [vmem:[%s885 + $0x70] sm:$0xff]
        %v901 = vld [vmem:[%s885 + $0x78] sm:$0xff]
        %v902 = vmin.f32 %v869, %v886
        %v903 = vmin.f32 %v870, %v887
        %v904 = vmin.f32 %v871, %v888
        %v905 = vmin.f32 %v872, %v889
        %v906 = vmin.f32 %v873, %v890
        %v907 = vmin.f32 %v874, %v891
        %v908 = vmin.f32 %v875, %v892
        %v909 = vmin.f32 %v876, %v893
        %v910 = vmin.f32 %v877, %v894
        %v911 = vmin.f32 %v878, %v895
        %v912 = vmin.f32 %v879, %v896
        %v913 = vmin.f32 %v880, %v897
        %v914 = vmin.f32 %v881, %v898
        %v915 = vmin.f32 %v882, %v899
        %v916 = vmin.f32 %v883, %v900
        %v917 = vmin.f32 %v884, %v901
        %v918 = vxor.u32 %v791, 2147483648
        %v919 = vxor.u32 %v796, 2147483648
        %v920 = vxor.u32 %v801, 2147483648
        %v921 = vxor.u32 %v806, 2147483648
        %v922 = vxor.u32 %v811, 2147483648
        %v923 = vxor.u32 %v816, 2147483648
        %v924 = vxor.u32 %v821, 2147483648
        %v925 = vxor.u32 %v826, 2147483648
        %v926 = vxor.u32 %v831, 2147483648
        %v927 = vxor.u32 %v836, 2147483648
        %v928 = vxor.u32 %v841, 2147483648
        %v929 = vxor.u32 %v846, 2147483648
        %v930 = vxor.u32 %v851, 2147483648
        %v931 = vxor.u32 %v856, 2147483648
        %v932 = vxor.u32 %v861, 2147483648
        %v933 = vxor.u32 %v866, 2147483648
        %v934 = vmul.f32 %v918, 1.442695
        %v935 = vpow.pop %v934
        %v936 = vmul.f32 %v919, 1.442695
        %v937 = vpow.pop %v936
        %v938 = vmul.f32 %v920, 1.442695
        %v939 = vpow.pop %v938
        %v940 = vmul.f32 %v921, 1.442695
        %v941 = vpow.pop %v940
        %v942 = vmul.f32 %v922, 1.442695
        %v943 = vpow.pop %v942
        %v944 = vmul.f32 %v923, 1.442695
        %v945 = vpow.pop %v944
        %v946 = vmul.f32 %v924, 1.442695
        %v947 = vpow.pop %v946
        %v948 = vmul.f32 %v925, 1.442695
        %v949 = vpow.pop %v948
        %v950 = vmul.f32 %v926, 1.442695
        %v951 = vpow.pop %v950
        %v952 = vmul.f32 %v927, 1.442695
        %v953 = vpow.pop %v952
        %v954 = vmul.f32 %v928, 1.442695
        %v955 = vpow.pop %v954
        %v956 = vmul.f32 %v929, 1.442695
        %v957 = vpow.pop %v956
        %v958 = vmul.f32 %v930, 1.442695
        %v959 = vpow.pop %v958
        %v960 = vmul.f32 %v931, 1.442695
        %v961 = vpow.pop %v960
        %v962 = vmul.f32 %v932, 1.442695
        %v963 = vpow.pop %v962
        %v964 = vmul.f32 %v933, 1.442695
        %v965 = vpow.pop %v964
        %v966 = vadd.f32 %v935, 1.0
        %v967 = vadd.f32 %v937, 1.0
        %v968 = vadd.f32 %v939, 1.0
        %v969 = vadd.f32 %v941, 1.0
        %v970 = vadd.f32 %v943, 1.0
        %v971 = vadd.f32 %v945, 1.0
        %v972 = vadd.f32 %v947, 1.0
        %v973 = vadd.f32 %v949, 1.0
        %v974 = vadd.f32 %v951, 1.0
        %v975 = vadd.f32 %v953, 1.0
        %v976 = vadd.f32 %v955, 1.0
        %v977 = vadd.f32 %v957, 1.0
        %v978 = vadd.f32 %v959, 1.0
        %v979 = vadd.f32 %v961, 1.0
        %v980 = vadd.f32 %v963, 1.0
        %v981 = vadd.f32 %v965, 1.0
        %v982 = vrcp.pop %v966
        %v983 = vmul.f32 1.0, %v982
        %v984 = vrcp.pop %v967
        %v985 = vmul.f32 1.0, %v984
        %v986 = vrcp.pop %v968
        %v987 = vmul.f32 1.0, %v986
        %v988 = vrcp.pop %v969
        %v989 = vmul.f32 1.0, %v988
        %v990 = vrcp.pop %v970
        %v991 = vmul.f32 1.0, %v990
        %v992 = vrcp.pop %v971
        %v993 = vmul.f32 1.0, %v992
        %v994 = vrcp.pop %v972
        %v995 = vmul.f32 1.0, %v994
        %v996 = vrcp.pop %v973
        %v997 = vmul.f32 1.0, %v996
        %v998 = vrcp.pop %v974
        %v999 = vmul.f32 1.0, %v998
        %v1000 = vrcp.pop %v975
        %v1001 = vmul.f32 1.0, %v1000
        %v1002 = vrcp.pop %v976
        %v1003 = vmul.f32 1.0, %v1002
        %v1004 = vrcp.pop %v977
        %v1005 = vmul.f32 1.0, %v1004
        %v1006 = vrcp.pop %v978
        %v1007 = vmul.f32 1.0, %v1006
        %v1008 = vrcp.pop %v979
        %v1009 = vmul.f32 1.0, %v1008
        %v1010 = vrcp.pop %v980
        %v1011 = vmul.f32 1.0, %v1010
        %v1012 = vrcp.pop %v981
        %v1013 = vmul.f32 1.0, %v1012
        %v1014 = vmul.f32 %v902, %v983
        %v1015 = vmul.f32 %v903, %v985
        %v1016 = vmul.f32 %v904, %v987
        %v1017 = vmul.f32 %v905, %v989
        %v1018 = vmul.f32 %v906, %v991
        %v1019 = vmul.f32 %v907, %v993
        %v1020 = vmul.f32 %v908, %v995
        %v1021 = vmul.f32 %v909, %v997
        %v1022 = vmul.f32 %v910, %v999
        %v1023 = vmul.f32 %v911, %v1001
        %v1024 = vmul.f32 %v912, %v1003
        %v1025 = vmul.f32 %v913, %v1005
        %v1026 = vmul.f32 %v914, %v1007
        %v1027 = vmul.f32 %v915, %v1009
        %v1028 = vmul.f32 %v916, %v1011
        %v1029 = vmul.f32 %v917, %v1013
        %1030 = vst [vmem:[%s335] sm:$0xff] %v1014
        %1031 = vst [vmem:[%s335 + $0x8] sm:$0xff] %v1015
        %1032 = vst [vmem:[%s335 + $0x10] sm:$0xff] %v1016
        %1033 = vst [vmem:[%s335 + $0x18] sm:$0xff] %v1017
        %1034 = vst [vmem:[%s335 + $0x20] sm:$0xff] %v1018
        %1035 = vst [vmem:[%s335 + $0x28] sm:$0xff] %v1019
        %1036 = vst [vmem:[%s335 + $0x30] sm:$0xff] %v1020
        %1037 = vst [vmem:[%s335 + $0x38] sm:$0xff] %v1021
        %1038 = vst [vmem:[%s335 + $0x40] sm:$0xff] %v1022
        %1039 = vst [vmem:[%s335 + $0x48] sm:$0xff] %v1023
        %1040 = vst [vmem:[%s335 + $0x50] sm:$0xff] %v1024
        %1041 = vst [vmem:[%s335 + $0x58] sm:$0xff] %v1025
        %1042 = vst [vmem:[%s335 + $0x60] sm:$0xff] %v1026
        %1043 = vst [vmem:[%s335 + $0x68] sm:$0xff] %v1027
        %1044 = vst [vmem:[%s335 + $0x70] sm:$0xff] %v1028
        %1045 = vst [vmem:[%s335 + $0x78] sm:$0xff] %v1029
        %s1046 = sand.u32 %s127, 1
        %s1047 = scalar_lea.sflag [#allocation4], %s1046
        %s1048 = sand.u32 %s127, 1
        %s1049 = smul.addr %s1048, 128
        %s1050 = scalar_lea.vmem [#allocation10], %s1049
        // Predicated region
        $region53: #{tpu_custom_call.1} parent=35 // pred_check
          %p1051 = pneg %p137
        $region54: #{tpu_custom_call.1} parent=35 // pred_check_branch
          %1053 = sbr.rel (%p1051) target = $region56
        $region55: #{tpu_custom_call.1} parent=35 // pred_region
          %s1054 = smul.u32 16, %s25
          %s1056 = ssub.s32 2048, 2048
          %1057 = vsyncadd %s1047, %s1056
          %s1058 = smul.addr %s1054, 128
          %s1059 = scalar_lea.hbm %s4, %s1058
          %s1060 = sshll.u32 %s1050, 4
          %s1061 = int_to_ptr.vmem [resolvable:$true] %s1060
          %1066 = dma.vmem_to_hbm [thread:$0]  %s1061, 2048, %s1059, %s1047, 128, 128, 8
        $region56: #{tpu_custom_call.1} parent=35 // pred_fallthru
          _
      $region36: #{tpu_custom_call.1} parent=5 // pred_fallthru
        _
      %p1067 = scmp.le.s32.totalorder 2, %s20
      // Predicated region
      $region57: #{tpu_custom_call.1} parent=5 // pred_check
        %p1068 = pneg %p1067
      $region58: #{tpu_custom_call.1} parent=5 // pred_check_branch
        %1070 = sbr.rel (%p1068) target = $region60
      $region59: #{tpu_custom_call.1} parent=5 // pred_region
        %s1071 = ssub.s32 %s20, 2
        // Predicated region
        $region61: #{tpu_custom_call.1} parent=59 // pred_check
          %p1072 = pneg %p143
        $region62: #{tpu_custom_call.1} parent=59 // pred_check_branch
          %1074 = sbr.rel (%p1072) target = $region64
        $region63: #{tpu_custom_call.1} parent=59 // pred_region
          %s1075 = sand.u32 %s128, 1
          %s1076 = scalar_lea.sflag [#allocation4], %s1075
          %s1077 = sand.u32 %s128, 1
          %s1078 = smul.addr %s1077, 128
          %s1079 = scalar_lea.vmem [#allocation10], %s1078
          %1080 = dma.done %s1076, 2048
        $region64: #{tpu_custom_call.1} parent=59 // pred_fallthru
          _
      $region60: #{tpu_custom_call.1} parent=5 // pred_fallthru
        _
    $region6: #{tpu_custom_call.1} parent=1 // loop_footer
      %s24 = sadd.s32 1, %s20
    $region7: #{tpu_custom_call.1} parent=1 // loop_footer_branch
      %19 = sbr.rel target = $region3
    $region8: #{tpu_custom_call.1} parent=1 // loop_exit
      _
    %1081 = vsyncpa [#allocation3], 1
    %s1082 = scalar_lea.sflag [#allocation3], 1
    %1083 = vsyncpa %s1082, 1
    %1084 = vsyncpa [#allocation6], 1
    %s1085 = scalar_lea.sflag [#allocation6], 1
    %1086 = vsyncpa %s1085, 1
    %1087 = vsyncpa [#allocation9], 1
    %1088 = vsyncpa [#allocation4], 1
    %s1089 = scalar_lea.sflag [#allocation4], 1
    %1090 = vsyncpa %s1089, 1

</llo_original>
